<compile_context>
chip_gen: v6e
topology: v6e:2x2x1
jax: 0.10.0
libtpu: 0.0.40
codegen_flags: <defaults>
</compile_context>

<pallas_src>
import jax
import jax.numpy as jnp
from jax.experimental import pallas as pl
from jax.experimental.pallas import tpu as pltpu


# ----------------------------- tiling helpers ------------------------------

_MAX_TILE = 32768            # lanes per tile (multiple of 128)


def _round_up(x, m):
    return ((x + m - 1) // m) * m


def _vmem_capacity_bytes():
    """Physical VMEM of the current TPU generation (fallback: v7x's 64 MiB)."""
    try:
        cap = int(pltpu.get_tpu_info().vmem_capacity_bytes)
        if cap > 0:
            return cap
    except Exception:
        pass
    return 64 * 2**20


def _tile_vmem_bytes(C, T, logit_itemsize):
    """VMEM estimate at tile size T: double-buffered inputs + in-kernel f32
    temporaries + (tiny, padded) accumulator blocks."""
    in_bytes = 2 * (C * T * logit_itemsize + T * 4)
    tmp_bytes = 6 * C * T * 4 + 8 * T * 4
    out_bytes = 8 * (8 * 128 * 4) * 2
    return in_bytes + tmp_bytes + out_bytes


def _choose_tiling(C, HW, logit_itemsize, budget):
    T = min(_round_up(HW, 128), _MAX_TILE)
    while T > 128 and _tile_vmem_bytes(C, T, logit_itemsize) > budget:
        T = _round_up(T // 2, 128)
    NT = -(-HW // T)                      # tiles along the pixel axis
    G = 2 if NT >= 2 else 1               # outer pixel split (v7x: 2 TCs)
    NTI = -(-NT // G)
    HW_pad = G * NTI * T
    return T, G, NTI, HW_pad


# ------------------------------ fused kernel -------------------------------

def _fused_ce_dice_kernel(logits_ref, labels_ref,
                          ce_ref, inter_ref, psum_ref, osum_ref):
    """One (batch b, split g, pixel-tile t) step of fused CE + Dice statistics.

    logits_ref: (1, C, T) input dtype     labels_ref: (1, 1, T) int32
    ce_ref:     (1, 1, 1, 1) f32 running sum of masked per-pixel CE
    inter_ref / psum_ref / osum_ref: (1, 1, C, 1) f32 per-class running sums
    All outputs are indexed only by (b, g) -> tiny accumulators resident in
    VMEM across the trailing tile axis.
    """
    t = pl.program_id(2)

    @pl.when(t == 0)
    def _():
        ce_ref[...] = jnp.zeros_like(ce_ref)
        inter_ref[...] = jnp.zeros_like(inter_ref)
        psum_ref[...] = jnp.zeros_like(psum_ref)
        osum_ref[...] = jnp.zeros_like(osum_ref)

    logits = logits_ref[0].astype(jnp.float32)      # (C, T) cast after DMA
    labels = labels_ref[0]                          # (1, T) int32
    C, _ = logits.shape

    # Boolean class match, reused everywhere a float one-hot would have been.
    cls = jax.lax.broadcasted_iota(jnp.int32, logits.shape, 0)
    match = cls == labels                           # (C, T) bool

    # valid-pixel mask: excludes padded tail / ignore_index (< 0) and
    # out-of-range labels (>= C) so numerator and denominator stay consistent.
    vmask = ((labels >= 0) & (labels < C)).astype(jnp.float32)   # (1, T)

    # softmax pieces computed ONCE, shared by CE and Dice.
    m = jnp.max(logits, axis=0, keepdims=True)      # (1, T)
    e = jnp.exp(logits - m)                         # (C, T)  EUP
    s = jnp.sum(e, axis=0, keepdims=True)           # (1, T)
    lse = m + jnp.log(s)                            # (1, T)

    # approx reciprocal (EUP) + one Newton step; fold the valid mask in so
    # `probs` is already masked (saves a separate (C, T) multiply).
    r = pl.reciprocal(s, approx=True)
    r = r * (2.0 - s * r)
    probs = e * (r * vmask)                         # (C, T) masked probs

    picked = jnp.sum(jnp.where(match, logits, 0.0), axis=0, keepdims=True)
    ce_row = (lse - picked) * vmask                 # (1, T) masked pixel CE

    # Collapse the lane (pixel) axis per tile -> tiny per-class partials.
    inter_c = jnp.sum(jnp.where(match, probs, 0.0), axis=-1, keepdims=True)
    psum_c = jnp.sum(probs, axis=-1, keepdims=True)
    osum_c = jnp.sum(match.astype(jnp.float32), axis=-1, keepdims=True)
    ce_s = jnp.sum(ce_row, axis=-1, keepdims=True)  # (1, 1)

    ce_ref[0, 0] += ce_s
    inter_ref[0, 0] += inter_c
    psum_ref[0, 0] += psum_c
    osum_ref[0, 0] += osum_c


# --------------------------- fused stats wrapper ----------------------------

@jax.jit
def _fused_seg_stats(logits, labels):
    """Runs the fused kernel once; returns tiny per-class / scalar statistics.

    logits: (B, C, H, W) float (f32 or bf16, kept in its HBM dtype)
    labels: (B, H, W) integer class ids (negative / >= C are ignored)
    returns (ce_sum, valid_count, inter[C], psum[C], osum[C])
    """
    B, C, H, W = logits.shape
    HW = H * W
    itemsize = jnp.dtype(logits.dtype).itemsize

    cap = _vmem_capacity_bytes()                      # 128 MiB v5e/v6e, 64 MiB v7x
    vmem_limit = int(min((cap * 3) // 4, 100 * 2**20))
    T, G, NTI, HW_pad = _choose_tiling(C, HW, itemsize, (vmem_limit * 85) // 100)

    logits_r = logits.reshape(B, C, HW)
    labels_r = labels.reshape(B, 1, HW).astype(jnp.int32)
    # TODO(synk): on v5e (near HBM roofline) pass labels as uint8/int16 when
    # C < 256 to shrink the label stream; int32 kept here for lowering safety.
    if HW_pad != HW:
        pad = HW_pad - HW
        logits_r = jnp.pad(logits_r, ((0, 0), (0, 0), (0, pad)))
        labels_r = jnp.pad(labels_r, ((0, 0), (0, 0), (0, pad)),
                           constant_values=-1)

    cost = pl.CostEstimate(
        flops=int(14 * B * C * HW_pad),
        transcendentals=int(B * C * HW_pad + 3 * B * HW_pad),
        bytes_accessed=int(B * C * HW_pad * itemsize + B * HW_pad * 4
                           + B * G * (3 * C + 1) * 4),
    )

    ce_p, inter_p, psum_p, osum_p = pl.pallas_call(
        _fused_ce_dice_kernel,
        grid=(B, G, NTI),
        in_specs=[
            pl.BlockSpec((1, C, T), lambda b, g, t: (b, 0, g * NTI + t)),
            pl.BlockSpec((1, 1, T), lambda b, g, t: (b, 0, g * NTI + t)),
        ],
        out_specs=[
            pl.BlockSpec((1, 1, 1, 1), lambda b, g, t: (b, g, 0, 0)),
            pl.BlockSpec((1, 1, C, 1), lambda b, g, t: (b, g, 0, 0)),
            pl.BlockSpec((1, 1, C, 1), lambda b, g, t: (b, g, 0, 0)),
            pl.BlockSpec((1, 1, C, 1), lambda b, g, t: (b, g, 0, 0)),
        ],
        out_shape=(
            jax.ShapeDtypeStruct((B, G, 1, 1), jnp.float32),
            jax.ShapeDtypeStruct((B, G, C, 1), jnp.float32),
            jax.ShapeDtypeStruct((B, G, C, 1), jnp.float32),
            jax.ShapeDtypeStruct((B, G, C, 1), jnp.float32),
        ),
        compiler_params=pltpu.CompilerParams(
            dimension_semantics=("parallel", "parallel", "arbitrary"),
            vmem_limit_bytes=vmem_limit),
        cost_estimate=cost,
    )(logits_r, labels_r)

    # Tiny final reductions in plain JAX.
    ce_sum = jnp.sum(ce_p)
    inter_c = jnp.sum(inter_p, axis=(0, 1, 3))
    psum_c = jnp.sum(psum_p, axis=(0, 1, 3))
    osum_c = jnp.sum(osum_p, axis=(0, 1, 3))
    valid = jnp.sum(osum_c)               # number of non-ignored pixels
    return ce_sum, valid, inter_c, psum_c, osum_c


def _ce_from_stats(stats):
    ce_sum, valid, _, _, _ = stats
    return ce_sum / jnp.maximum(valid, 1.0)


def _dice_from_stats(stats, smooth=1.0):
    _, _, inter_c, psum_c, osum_c = stats
    dice = (2.0 * inter_c + smooth) / (psum_c + osum_c + smooth)
    return jnp.mean(1.0 - dice)


class _SharedSegStats:
    """Caches the fused-kernel stats for the last (logits, labels) pair so that
    both sub-losses of ComposeLoss trigger a single kernel launch / single HBM
    stream of the logits (ComposeLoss passes identical array objects).

    TODO(synk): identity-keyed caching can retain one old trace's tracers and
    misses when callers re-create arrays; for jitted training loops call
    _fused_seg_stats directly and derive both losses from its result.
    """

    def __init__(self):
        self._key = None
        self._stats = None

    def __call__(self, logits, labels):
        if (self._key is None or self._key[0] is not logits
                or self._key[1] is not labels):
            self._stats = _fused_seg_stats(logits, labels)
            self._key = (logits, labels)
        return self._stats


def make_ce_and_dice_losses(smooth=1.0):
    """Returns (cross_entropy_loss, dice_loss) callables backed by one fused
    Pallas kernel shared between them.
    TODO(synk): forward only — no custom_vjp; jax.grad through the kernel is
    not supported (use a pure-JAX fallback for the backward pass)."""
    shared = _SharedSegStats()

    def cross_entropy_loss(logits, labels):
        return _ce_from_stats(shared(logits, labels))

    def dice_loss(logits, labels):
        return _dice_from_stats(shared(logits, labels), smooth)

    return cross_entropy_loss, dice_loss


# ------------------------------ ComposeLoss --------------------------------

class ComposeLoss:
    """JAX port of uyoloseg ComposeLoss (forward semantics preserved)."""

    def __init__(self, losses=None, coef=[1.0], indexes=[[0, 0, 0]], names=None):
        if not isinstance(losses, list):
            raise TypeError('`losses` must be a list!')
        if not isinstance(coef, list):
            raise TypeError('`coef` must be a list!')
        if not isinstance(indexes, list):
            raise TypeError('`indexes` must be a list!')
        loss_indexes = [idx[0] for idx in indexes]
        if max(loss_indexes) >= len(losses) or min(loss_indexes) < 0:
            raise ValueError(
                'The loss number in `indexes` should in [0, {}).'.format(len(losses)))
        if len(indexes) != len(coef):
            raise ValueError(
                'The length of `indexes` should equal to `coef`, but they are '
                '{} and {}.'.format(len(indexes), len(coef)))
        self.losses = losses
        self.coef = coef
        self.indexes = indexes
        self.names = names

    def __call__(self, logits, labels):
        if not isinstance(logits, list):
            logits = [logits]
        if not isinstance(labels, list):
            labels = [labels]
        logit_indexes = [idx[1] for idx in self.indexes]
        label_indexes = [idx[2] for idx in self.indexes]
        if max(logit_indexes) >= len(logits) and min(logit_indexes) < 0:
            raise ValueError('Bad logit indexes {}'.format(logit_indexes))
        if max(label_indexes) >= len(labels) or min(label_indexes) < 0:
            raise ValueError('Bad label indexes {}'.format(label_indexes))
        if self.names is None:
            names = [f'loss_{i}' for i in range(len(self.indexes))]
        else:
            names = self.names
        # TODO(synk): list-of-losses dispatch / dict packing stays Python glue
        # (as in the PyTorch original); only the sub-loss math runs on TPU.
        loss_list = [w * self.losses[idx[0]](logits[idx[1]], labels[idx[2]])
                     for idx, w in zip(self.indexes, self.coef)]
        return (sum(loss_list), dict(zip(names, loss_list)))


# ---------------------------- pure-JAX reference ----------------------------

def _ref_ce(logits, labels):
    lse = jax.scipy.special.logsumexp(logits, axis=1)                # (B,H,W)
    picked = jnp.take_along_axis(logits, labels[:, None], axis=1)[:, 0]
    return jnp.mean(lse - picked)


def _ref_dice(logits, labels, smooth=1.0):
    C = logits.shape[1]
    probs = jax.nn.softmax(logits, axis=1)
    onehot = jax.nn.one_hot(labels, C, axis=1, dtype=jnp.float32)
    inter = jnp.sum(probs * onehot, axis=(0, 2, 3))
    card = jnp.sum(probs, axis=(0, 2, 3)) + jnp.sum(onehot, axis=(0, 2, 3))
    return jnp.mean(1.0 - (2.0 * inter + smooth) / (card + smooth))


# ----------------------------------- main -----------------------------------

if __name__ == "__main__":
    key = jax.random.PRNGKey(0)
    k1, k2 = jax.random.split(key)

    B, C, H, W = 2, 4, 16, 16
    logits = jax.random.normal(k1, (B, C, H, W), dtype=jnp.float32)
    labels = jax.random.randint(k2, (B, H, W), 0, C, dtype=jnp.int32)

    ce_loss, dice_loss = make_ce_and_dice_losses(smooth=1.0)
    compose = ComposeLoss(
        losses=[ce_loss, dice_loss],
        coef=[1.0, 0.5],
        indexes=[[0, 0, 0], [1, 0, 0]],
    )

    total, per_loss = compose(logits, labels)
    total = jax.block_until_ready(total)
    per_loss = {k: jax.block_until_ready(v) for k, v in per_loss.items()}

    # Verify against a pure-JAX reference of the same composed forward.
    ref_ce = _ref_ce(logits, labels)
    ref_dice = _ref_dice(logits, labels)
    ref_total = 1.0 * ref_ce + 0.5 * ref_dice

    # CE path uses no approximate ops -> tight tolerance.
    assert jnp.allclose(per_loss["loss_0"], 1.0 * ref_ce,
                        rtol=1e-5, atol=1e-5), (per_loss["loss_0"], ref_ce)
    # Dice path: approx reciprocal + one Newton step -> near-f32 accuracy.
    assert jnp.allclose(per_loss["loss_1"], 0.5 * ref_dice,
                        rtol=1e-4, atol=1e-4), (per_loss["loss_1"], ref_dice)
    assert jnp.allclose(total, ref_total, rtol=1e-4, atol=1e-4), (total, ref_total)

    print("KERNEL_OK")
</pallas_src>

<mosaic_0001>
module attributes {stable_mosaic.version = 11 : i64} {
  func.func @_fused_ce_dice_kernel(%arg0: i32, %arg1: i32, %arg2: i32, %arg3: memref<1x4x256xf32, #tpu.memory_space<vmem>>, %arg4: memref<1x1x256xi32, #tpu.memory_space<vmem>>, %arg5: memref<1x1x1x1xf32, #tpu.memory_space<vmem>>, %arg6: memref<1x1x4x1xf32, #tpu.memory_space<vmem>>, %arg7: memref<1x1x4x1xf32, #tpu.memory_space<vmem>>, %arg8: memref<1x1x4x1xf32, #tpu.memory_space<vmem>>) attributes {dimension_semantics = [#tpu.dimension_semantics<parallel>, #tpu.dimension_semantics<parallel>, #tpu.dimension_semantics<arbitrary>], iteration_bounds = array<i64: 2, 1, 1>, scalar_prefetch = 0 : i64, scratch_operands = 0 : i64, tpu.core_type = #tpu.core_type<tc>, window_params = [{transform_indices = @transform_0, window_bounds = array<i64: 1, 4, 256>}, {transform_indices = @transform_1, window_bounds = array<i64: 1, 1, 256>}, {transform_indices = @transform_2, window_bounds = array<i64: 1, 1, 1, 1>}, {transform_indices = @transform_3, window_bounds = array<i64: 1, 1, 4, 1>}, {transform_indices = @transform_4, window_bounds = array<i64: 1, 1, 4, 1>}, {transform_indices = @transform_5, window_bounds = array<i64: 1, 1, 4, 1>}]} {
    %c0_i32 = arith.constant 0 : i32
    %0 = arith.cmpi eq, %arg2, %c0_i32 : i32
    %1 = arith.extui %0 : i1 to i32
    %c0_i32_0 = arith.constant 0 : i32
    %2 = arith.cmpi ne, %1, %c0_i32_0 : i32
    scf.if %2 {
      %cst_48 = arith.constant 0.000000e+00 : f32
      %76 = vector.broadcast %cst_48 : f32 to vector<1x1x1x1xf32>
      %c0_49 = arith.constant 0 : index
      %c0_50 = arith.constant 0 : index
      %c0_51 = arith.constant 0 : index
      %c0_52 = arith.constant 0 : index
      %77 = vector.load %arg5[%c0_49, %c0_50, %c0_51, %c0_52] : memref<1x1x1x1xf32, #tpu.memory_space<vmem>>, vector<1x1x1x1xf32>
      tpu.vector_store %arg5[%c0_49, %c0_50, %c0_51, %c0_52], %76 {strides = array<i32>} : memref<1x1x1x1xf32, #tpu.memory_space<vmem>>, vector<1x1x1x1xf32>,
      %cst_53 = arith.constant 0.000000e+00 : f32
      %78 = vector.broadcast %cst_53 : f32 to vector<1x1x4x1xf32>
      %c0_54 = arith.constant 0 : index
      %c0_55 = arith.constant 0 : index
      %c0_56 = arith.constant 0 : index
      %c0_57 = arith.constant 0 : index
      %79 = vector.load %arg6[%c0_54, %c0_55, %c0_56, %c0_57] : memref<1x1x4x1xf32, #tpu.memory_space<vmem>>, vector<1x1x4x1xf32>
      tpu.vector_store %arg6[%c0_54, %c0_55, %c0_56, %c0_57], %78 {strides = array<i32>} : memref<1x1x4x1xf32, #tpu.memory_space<vmem>>, vector<1x1x4x1xf32>,
      %cst_58 = arith.constant 0.000000e+00 : f32
      %80 = vector.broadcast %cst_58 : f32 to vector<1x1x4x1xf32>
      %c0_59 = arith.constant 0 : index
      %c0_60 = arith.constant 0 : index
      %c0_61 = arith.constant 0 : index
      %c0_62 = arith.constant 0 : index
      %81 = vector.load %arg7[%c0_59, %c0_60, %c0_61, %c0_62] : memref<1x1x4x1xf32, #tpu.memory_space<vmem>>, vector<1x1x4x1xf32>
      tpu.vector_store %arg7[%c0_59, %c0_60, %c0_61, %c0_62], %80 {strides = array<i32>} : memref<1x1x4x1xf32, #tpu.memory_space<vmem>>, vector<1x1x4x1xf32>,
      %cst_63 = arith.constant 0.000000e+00 : f32
      %82 = vector.broadcast %cst_63 : f32 to vector<1x1x4x1xf32>
      %c0_64 = arith.constant 0 : index
      %c0_65 = arith.constant 0 : index
      %c0_66 = arith.constant 0 : index
      %c0_67 = arith.constant 0 : index
      %83 = vector.load %arg8[%c0_64, %c0_65, %c0_66, %c0_67] : memref<1x1x4x1xf32, #tpu.memory_space<vmem>>, vector<1x1x4x1xf32>
      tpu.vector_store %arg8[%c0_64, %c0_65, %c0_66, %c0_67], %82 {strides = array<i32>} : memref<1x1x4x1xf32, #tpu.memory_space<vmem>>, vector<1x1x4x1xf32>,
    } else {
    }
    %c0 = arith.constant 0 : index
    %c0_1 = arith.constant 0 : index
    %c0_2 = arith.constant 0 : index
    %3 = vector.load %arg3[%c0, %c0_1, %c0_2] : memref<1x4x256xf32, #tpu.memory_space<vmem>>, vector<1x4x256xf32>
    %4 = vector.shape_cast %3 : vector<1x4x256xf32> to vector<4x256xf32>
    %c0_3 = arith.constant 0 : index
    %c0_4 = arith.constant 0 : index
    %c0_5 = arith.constant 0 : index
    %5 = vector.load %arg4[%c0_3, %c0_4, %c0_5] : memref<1x1x256xi32, #tpu.memory_space<vmem>>, vector<1x1x256xi32>
    %6 = vector.shape_cast %5 : vector<1x1x256xi32> to vector<1x256xi32>
    %7 = tpu.iota {dimensions = array<i32: 0>} : vector<4x256xi32>
    %8 = vector.broadcast %6 : vector<1x256xi32> to vector<4x256xi32>
    %9 = arith.cmpi eq, %7, %8 : vector<4x256xi32>
    %c0_i32_6 = arith.constant 0 : i32
    %10 = vector.broadcast %c0_i32_6 : i32 to vector<1x256xi32>
    %11 = arith.cmpi sge, %6, %10 : vector<1x256xi32>
    %c4_i32 = arith.constant 4 : i32
    %12 = vector.broadcast %c4_i32 : i32 to vector<1x256xi32>
    %13 = arith.cmpi slt, %6, %12 : vector<1x256xi32>
    %14 = arith.andi %11, %13 : vector<1x256xi1>
    %15 = arith.extui %14 : vector<1x256xi1> to vector<1x256xi32>
    %16 = arith.sitofp %15 : vector<1x256xi32> to vector<1x256xf32>
    %cst = arith.constant dense<0xFF800000> : vector<256xf32>
    %17 = vector.multi_reduction <maximumf>, %4, %cst [0] : vector<4x256xf32> to vector<256xf32>
    %18 = vector.shape_cast %17 : vector<256xf32> to vector<1x256xf32>
    %19 = vector.broadcast %18 : vector<1x256xf32> to vector<4x256xf32>
    %20 = arith.subf %4, %19 : vector<4x256xf32>
    %21 = math.exp %20 : vector<4x256xf32>
    %cst_7 = arith.constant dense<0.000000e+00> : vector<256xf32>
    %22 = vector.multi_reduction <add>, %21, %cst_7 [0] : vector<4x256xf32> to vector<256xf32>
    %23 = vector.shape_cast %22 : vector<256xf32> to vector<1x256xf32>
    %24 = math.log %23 : vector<1x256xf32>
    %25 = arith.addf %18, %24 : vector<1x256xf32>
    %26 = tpu.reciprocal %23 {approx = true} : vector<1x256xf32> -> vector<1x256xf32>
    %27 = arith.mulf %23, %26 : vector<1x256xf32>
    %cst_8 = arith.constant 2.000000e+00 : f32
    %28 = vector.broadcast %cst_8 : f32 to vector<1x256xf32>
    %29 = arith.subf %28, %27 : vector<1x256xf32>
    %30 = arith.mulf %26, %29 : vector<1x256xf32>
    %31 = arith.mulf %30, %16 : vector<1x256xf32>
    %32 = vector.broadcast %31 : vector<1x256xf32> to vector<4x256xf32>
    %33 = arith.mulf %21, %32 : vector<4x256xf32>
    %cst_9 = arith.constant 0.000000e+00 : f32
    %34 = vector.broadcast %cst_9 : f32 to vector<4x256xf32>
    %35 = arith.select %9, %4, %34 : vector<4x256xi1>, vector<4x256xf32>
    %cst_10 = arith.constant dense<0.000000e+00> : vector<256xf32>
    %36 = vector.multi_reduction <add>, %35, %cst_10 [0] : vector<4x256xf32> to vector<256xf32>
    %37 = vector.shape_cast %36 : vector<256xf32> to vector<1x256xf32>
    %38 = arith.subf %25, %37 : vector<1x256xf32>
    %39 = arith.mulf %38, %16 : vector<1x256xf32>
    %cst_11 = arith.constant 0.000000e+00 : f32
    %40 = vector.broadcast %cst_11 : f32 to vector<4x256xf32>
    %41 = arith.select %9, %33, %40 : vector<4x256xi1>, vector<4x256xf32>
    %cst_12 = arith.constant dense<0.000000e+00> : vector<4xf32>
    %42 = vector.multi_reduction <add>, %41, %cst_12 [1] : vector<4x256xf32> to vector<4xf32>
    %43 = vector.shape_cast %42 : vector<4xf32> to vector<4x1xf32>
    %cst_13 = arith.constant dense<0.000000e+00> : vector<4xf32>
    %44 = vector.multi_reduction <add>, %33, %cst_13 [1] : vector<4x256xf32> to vector<4xf32>
    %45 = vector.shape_cast %44 : vector<4xf32> to vector<4x1xf32>
    %46 = arith.extui %9 : vector<4x256xi1> to vector<4x256xi32>
    %47 = arith.sitofp %46 : vector<4x256xi32> to vector<4x256xf32>
    %cst_14 = arith.constant dense<0.000000e+00> : vector<4xf32>
    %48 = vector.multi_reduction <add>, %47, %cst_14 [1] : vector<4x256xf32> to vector<4xf32>
    %49 = vector.shape_cast %48 : vector<4xf32> to vector<4x1xf32>
    %cst_15 = arith.constant dense<0.000000e+00> : vector<1xf32>
    %50 = vector.multi_reduction <add>, %39, %cst_15 [1] : vector<1x256xf32> to vector<1xf32>
    %51 = vector.shape_cast %50 : vector<1xf32> to vector<1x1xf32>
    %c0_16 = arith.constant 0 : index
    %c0_17 = arith.constant 0 : index
    %c0_18 = arith.constant 0 : index
    %c0_19 = arith.constant 0 : index
    %52 = vector.load %arg5[%c0_16, %c0_17, %c0_18, %c0_19] : memref<1x1x1x1xf32, #tpu.memory_space<vmem>>, vector<1x1x1x1xf32>
    %53 = vector.shape_cast %52 : vector<1x1x1x1xf32> to vector<1x1xf32>
    %54 = arith.addf %53, %51 : vector<1x1xf32>
    %c0_20 = arith.constant 0 : index
    %c0_21 = arith.constant 0 : index
    %c0_22 = arith.constant 0 : index
    %c0_23 = arith.constant 0 : index
    %55 = vector.load %arg5[%c0_20, %c0_21, %c0_22, %c0_23] : memref<1x1x1x1xf32, #tpu.memory_space<vmem>>, vector<1x1x1x1xf32>
    %56 = vector.shape_cast %55 : vector<1x1x1x1xf32> to vector<1x1xf32>
    %57 = vector.shape_cast %54 : vector<1x1xf32> to vector<1x1x1x1xf32>
    tpu.vector_store %arg5[%c0_20, %c0_21, %c0_22, %c0_23], %57 {strides = array<i32>} : memref<1x1x1x1xf32, #tpu.memory_space<vmem>>, vector<1x1x1x1xf32>,
    %c0_24 = arith.constant 0 : index
    %c0_25 = arith.constant 0 : index
    %c0_26 = arith.constant 0 : index
    %c0_27 = arith.constant 0 : index
    %58 = vector.load %arg6[%c0_24, %c0_25, %c0_26, %c0_27] : memref<1x1x4x1xf32, #tpu.memory_space<vmem>>, vector<1x1x4x1xf32>
    %59 = vector.shape_cast %58 : vector<1x1x4x1xf32> to vector<4x1xf32>
    %60 = arith.addf %59, %43 : vector<4x1xf32>
    %c0_28 = arith.constant 0 : index
    %c0_29 = arith.constant 0 : index
    %c0_30 = arith.constant 0 : index
    %c0_31 = arith.constant 0 : index
    %61 = vector.load %arg6[%c0_28, %c0_29, %c0_30, %c0_31] : memref<1x1x4x1xf32, #tpu.memory_space<vmem>>, vector<1x1x4x1xf32>
    %62 = vector.shape_cast %61 : vector<1x1x4x1xf32> to vector<4x1xf32>
    %63 = vector.shape_cast %60 : vector<4x1xf32> to vector<1x1x4x1xf32>
    tpu.vector_store %arg6[%c0_28, %c0_29, %c0_30, %c0_31], %63 {strides = array<i32>} : memref<1x1x4x1xf32, #tpu.memory_space<vmem>>, vector<1x1x4x1xf32>,
    %c0_32 = arith.constant 0 : index
    %c0_33 = arith.constant 0 : index
    %c0_34 = arith.constant 0 : index
    %c0_35 = arith.constant 0 : index
    %64 = vector.load %arg7[%c0_32, %c0_33, %c0_34, %c0_35] : memref<1x1x4x1xf32, #tpu.memory_space<vmem>>, vector<1x1x4x1xf32>
    %65 = vector.shape_cast %64 : vector<1x1x4x1xf32> to vector<4x1xf32>
    %66 = arith.addf %65, %45 : vector<4x1xf32>
    %c0_36 = arith.constant 0 : index
    %c0_37 = arith.constant 0 : index
    %c0_38 = arith.constant 0 : index
    %c0_39 = arith.constant 0 : index
    %67 = vector.load %arg7[%c0_36, %c0_37, %c0_38, %c0_39] : memref<1x1x4x1xf32, #tpu.memory_space<vmem>>, vector<1x1x4x1xf32>
    %68 = vector.shape_cast %67 : vector<1x1x4x1xf32> to vector<4x1xf32>
    %69 = vector.shape_cast %66 : vector<4x1xf32> to vector<1x1x4x1xf32>
    tpu.vector_store %arg7[%c0_36, %c0_37, %c0_38, %c0_39], %69 {strides = array<i32>} : memref<1x1x4x1xf32, #tpu.memory_space<vmem>>, vector<1x1x4x1xf32>,
    %c0_40 = arith.constant 0 : index
    %c0_41 = arith.constant 0 : index
    %c0_42 = arith.constant 0 : index
    %c0_43 = arith.constant 0 : index
    %70 = vector.load %arg8[%c0_40, %c0_41, %c0_42, %c0_43] : memref<1x1x4x1xf32, #tpu.memory_space<vmem>>, vector<1x1x4x1xf32>
    %71 = vector.shape_cast %70 : vector<1x1x4x1xf32> to vector<4x1xf32>
    %72 = arith.addf %71, %49 : vector<4x1xf32>
    %c0_44 = arith.constant 0 : index
    %c0_45 = arith.constant 0 : index
    %c0_46 = arith.constant 0 : index
    %c0_47 = arith.constant 0 : index
    %73 = vector.load %arg8[%c0_44, %c0_45, %c0_46, %c0_47] : memref<1x1x4x1xf32, #tpu.memory_space<vmem>>, vector<1x1x4x1xf32>
    %74 = vector.shape_cast %73 : vector<1x1x4x1xf32> to vector<4x1xf32>
    %75 = vector.shape_cast %72 : vector<4x1xf32> to vector<1x1x4x1xf32>
    tpu.vector_store %arg8[%c0_44, %c0_45, %c0_46, %c0_47], %75 {strides = array<i32>} : memref<1x1x4x1xf32, #tpu.memory_space<vmem>>, vector<1x1x4x1xf32>,
    return
  }
  func.func @transform_0(%arg0: i32, %arg1: i32, %arg2: i32) -> (i32, i32, i32) {
    %c1_i32 = arith.constant 1 : i32
    %0 = arith.muli %arg1, %c1_i32 : i32
    %1 = arith.addi %0, %arg2 : i32
    %c0_i32 = arith.constant 0 : i32
    %c0_i32_0 = arith.constant 0 : i32
    return %arg0, %c0_i32, %1 : i32, i32, i32
  }
  func.func @transform_1(%arg0: i32, %arg1: i32, %arg2: i32) -> (i32, i32, i32) {
    %c1_i32 = arith.constant 1 : i32
    %0 = arith.muli %arg1, %c1_i32 : i32
    %1 = arith.addi %0, %arg2 : i32
    %c0_i32 = arith.constant 0 : i32
    %c0_i32_0 = arith.constant 0 : i32
    return %arg0, %c0_i32, %1 : i32, i32, i32
  }
  func.func @transform_2(%arg0: i32, %arg1: i32, %arg2: i32) -> (i32, i32, i32, i32) {
    %c0_i32 = arith.constant 0 : i32
    %c0_i32_0 = arith.constant 0 : i32
    %c0_i32_1 = arith.constant 0 : i32
    return %arg0, %arg1, %c0_i32, %c0_i32_0 : i32, i32, i32, i32
  }
  func.func @transform_3(%arg0: i32, %arg1: i32, %arg2: i32) -> (i32, i32, i32, i32) {
    %c0_i32 = arith.constant 0 : i32
    %c0_i32_0 = arith.constant 0 : i32
    %c0_i32_1 = arith.constant 0 : i32
    return %arg0, %arg1, %c0_i32, %c0_i32_0 : i32, i32, i32, i32
  }
  func.func @transform_4(%arg0: i32, %arg1: i32, %arg2: i32) -> (i32, i32, i32, i32) {
    %c0_i32 = arith.constant 0 : i32
    %c0_i32_0 = arith.constant 0 : i32
    %c0_i32_1 = arith.constant 0 : i32
    return %arg0, %arg1, %c0_i32, %c0_i32_0 : i32, i32, i32, i32
  }
  func.func @transform_5(%arg0: i32, %arg1: i32, %arg2: i32) -> (i32, i32, i32, i32) {
    %c0_i32 = arith.constant 0 : i32
    %c0_i32_0 = arith.constant 0 : i32
    %c0_i32_1 = arith.constant 0 : i32
    return %arg0, %arg1, %c0_i32, %c0_i32_0 : i32, i32, i32, i32
  }
}

</mosaic_0001>

<llo_original>
// kernel: _fused_seg_stats.1
$region0: #{_fused_seg_stats.1}
  #allocation0 [shape = 'u32[]', space=smem, size = 0x4, offset = 0x4, fixed_abs, tag = 'smem constant byte address 0x4 - core index']
  #allocation1 [shape = 'u32[144,128]{1,0:T(1,128)}', space=vmem, size = 0x12000, scoped, tag = 'internal scratch']
  %s0 = inlined_call_operand.vmem [shape: f32[2,4,256], index: 0, kind: input, shape index: {}]
  %s1 = inlined_call_operand.vmem [shape: s32[2,1,256], index: 1, kind: input, shape index: {}]
  %s2 = inlined_call_operand.vmem [shape: f32[2,1,1,1], index: 2, kind: output, shape index: {0}]
  %s3 = inlined_call_operand.vmem [shape: f32[2,1,4,1], index: 3, kind: output, shape index: {1}]
  %s4 = inlined_call_operand.vmem [shape: f32[2,1,4,1], index: 4, kind: output, shape index: {2}]
  %s5 = inlined_call_operand.vmem [shape: f32[2,1,4,1], index: 5, kind: output, shape index: {3}]
  %6 = xla_tuple %s2, %s3, %s4, %s5
  %s7 = sld [smem:[#allocation0]]
  $region69: #{_fused_seg_stats.1} parent=0
    _
  %s9 = ssub.s32 1, %s7
  %s10 = scalar_select 0, %s9, %s7
  loop: start=0, step=1, limit=4
  $region2: #{_fused_seg_stats.1} parent=0 // loop_pre_header
    _
  $region3: #{_fused_seg_stats.1} parent=0 // loop_header
    %s12 = sphi 0, %s16
    %p13 = scmp.ge.s32.totalorder %s12, 4
    %s19 = sphi 0, %s38
    %s20 = sphi 0, %s34
    %s21 = sphi 0, %s30
    %s22 = sphi 0, %s19
    %s23 = sphi 0, %s20
    %s24 = sphi 0, %s21
    %s25 = sphi 0, %s22
    %s26 = sphi 0, %s23
    %s27 = sphi 0, %s24
    %s45 = sphi 0, %s47
    %s48 = sphi 0, %s45
    %s49 = sphi 0, %s48
    %s65 = sphi 0, %s49
    %s75 = sphi 0, %s77
    %s78 = sphi 0, %s75
    %s79 = sphi 0, %s78
    %s95 = sphi 0, %s79
    %s103 = sphi 0, %s105
    %s106 = sphi 0, %s103
    %s107 = sphi 0, %s106
    %s123 = sphi 0, %s107
    %s131 = sphi 0, %s133
    %s134 = sphi 0, %s131
    %s135 = sphi 0, %s134
    %s151 = sphi 0, %s135
    %s159 = sphi 0, %s161
    %s162 = sphi 0, %s159
    %s163 = sphi 0, %s162
    %s179 = sphi 0, %s163
    %s187 = sphi 0, %s189
    %s190 = sphi 0, %s187
    %s191 = sphi 0, %s190
    %s207 = sphi 0, %s191
  $region4: #{_fused_seg_stats.1} parent=0 // loop_header_branch
    %15 = sbr.rel (%p13) target = $region8
  $region5: #{_fused_seg_stats.1} parent=0 // loop_body
    %s17 = ssub.s32 %s12, 1
    %s18 = ssub.s32 %s12, 2
    %s28 = sadd.s32 1, %s21
    %p29 = scmp.ge.s32.totalorder %s28, 1
    %s30 = scalar_select %p29, 0, %s28
    %s31 = sadd.s32 1, %s20
    %s32 = scalar_select %p29, %s31, %s20
    %p33 = scmp.ge.s32.totalorder %s32, 1
    %s34 = scalar_select %p33, 0, %s32
    %s35 = sadd.s32 1, %s19
    %s36 = scalar_select %p33, %s35, %s19
    %p37 = scmp.ge.s32.totalorder %s36, 2
    %s38 = scalar_select %p37, 0, %s36
    %s39 = sadd.s32 %s20, %s21
    %s40 = sadd.s32 %s34, %s30
    %s41 = ssub.s32 %s19, %s38
    %s42 = ssub.s32 %s39, %s40
    %s43 = sor.u32 %s41, %s42
    %p44 = scmp.eq.s32.totalorder %s43, 0
    %s46 = sadd.s32 %s45, 1
    %s47 = scalar_select %p44, %s45, %s46
    %p50 = pneg %p44
    %p51 = scmp.eq.s32.totalorder %s12, 1
    %p52 = por %p50, %p51
    %p53 = scmp.ne.s32.totalorder %s45, %s48
    %p54 = scmp.eq.s32.totalorder %s12, 0
    %p55 = por %p53, %p54
    %p56 = scmp.ne.s32.totalorder %s45, %s48
    %p57 = scmp.eq.s32.totalorder %s17, 1
    %p58 = por %p56, %p57
    %p59 = scmp.ne.s32.totalorder %s48, %s49
    %p60 = scmp.eq.s32.totalorder %s17, 0
    %p61 = por %p59, %p60
    %p62 = scmp.ne.s32.totalorder %s48, %s49
    %p63 = scmp.eq.s32.totalorder %s18, 1
    %p64 = por %p62, %p63
    %p66 = scmp.ne.s32.totalorder %s49, %s65
    %p67 = scmp.eq.s32.totalorder %s18, 0
    %p68 = por %p66, %p67
    %s69 = sadd.s32 %s20, %s21
    %s70 = sadd.s32 %s34, %s30
    %s71 = ssub.s32 %s19, %s38
    %s72 = ssub.s32 %s69, %s70
    %s73 = sor.u32 %s71, %s72
    %p74 = scmp.eq.s32.totalorder %s73, 0
    %s76 = sadd.s32 %s75, 1
    %s77 = scalar_select %p74, %s75, %s76
    %p80 = pneg %p74
    %p81 = scmp.eq.s32.totalorder %s12, 1
    %p82 = por %p80, %p81
    %p83 = scmp.ne.s32.totalorder %s75, %s78
    %p84 = scmp.eq.s32.totalorder %s12, 0
    %p85 = por %p83, %p84
    %p86 = scmp.ne.s32.totalorder %s75, %s78
    %p87 = scmp.eq.s32.totalorder %s17, 1
    %p88 = por %p86, %p87
    %p89 = scmp.ne.s32.totalorder %s78, %s79
    %p90 = scmp.eq.s32.totalorder %s17, 0
    %p91 = por %p89, %p90
    %p92 = scmp.ne.s32.totalorder %s78, %s79
    %p93 = scmp.eq.s32.totalorder %s18, 1
    %p94 = por %p92, %p93
    %p96 = scmp.ne.s32.totalorder %s79, %s95
    %p97 = scmp.eq.s32.totalorder %s18, 0
    %p98 = por %p96, %p97
    %s99 = ssub.s32 %s19, %s38
    %s100 = ssub.s32 %s20, %s34
    %s101 = sor.u32 %s99, %s100
    %p102 = scmp.eq.s32.totalorder %s101, 0
    %s104 = sadd.s32 %s103, 1
    %s105 = scalar_select %p102, %s103, %s104
    %p108 = pneg %p102
    %p109 = scmp.eq.s32.totalorder %s12, 1
    %p110 = por %p108, %p109
    %p111 = scmp.ne.s32.totalorder %s103, %s106
    %p112 = scmp.eq.s32.totalorder %s12, 0
    %p113 = por %p111, %p112
    %p114 = scmp.ne.s32.totalorder %s103, %s106
    %p115 = scmp.eq.s32.totalorder %s17, 1
    %p116 = por %p114, %p115
    %p117 = scmp.ne.s32.totalorder %s106, %s107
    %p118 = scmp.eq.s32.totalorder %s17, 0
    %p119 = por %p117, %p118
    %p120 = scmp.ne.s32.totalorder %s106, %s107
    %p121 = scmp.eq.s32.totalorder %s18, 1
    %p122 = por %p120, %p121
    %p124 = scmp.ne.s32.totalorder %s107, %s123
    %p125 = scmp.eq.s32.totalorder %s18, 0
    %p126 = por %p124, %p125
    %s127 = ssub.s32 %s19, %s38
    %s128 = ssub.s32 %s20, %s34
    %s129 = sor.u32 %s127, %s128
    %p130 = scmp.eq.s32.totalorder %s129, 0
    %s132 = sadd.s32 %s131, 1
    %s133 = scalar_select %p130, %s131, %s132
    %p136 = pneg %p130
    %p137 = scmp.eq.s32.totalorder %s12, 1
    %p138 = por %p136, %p137
    %p139 = scmp.ne.s32.totalorder %s131, %s134
    %p140 = scmp.eq.s32.totalorder %s12, 0
    %p141 = por %p139, %p140
    %p142 = scmp.ne.s32.totalorder %s131, %s134
    %p143 = scmp.eq.s32.totalorder %s17, 1
    %p144 = por %p142, %p143
    %p145 = scmp.ne.s32.totalorder %s134, %s135
    %p146 = scmp.eq.s32.totalorder %s17, 0
    %p147 = por %p145, %p146
    %p148 = scmp.ne.s32.totalorder %s134, %s135
    %p149 = scmp.eq.s32.totalorder %s18, 1
    %p150 = por %p148, %p149
    %p152 = scmp.ne.s32.totalorder %s135, %s151
    %p153 = scmp.eq.s32.totalorder %s18, 0
    %p154 = por %p152, %p153
    %s155 = ssub.s32 %s19, %s38
    %s156 = ssub.s32 %s20, %s34
    %s157 = sor.u32 %s155, %s156
    %p158 = scmp.eq.s32.totalorder %s157, 0
    %s160 = sadd.s32 %s159, 1
    %s161 = scalar_select %p158, %s159, %s160
    %p164 = pneg %p158
    %p165 = scmp.eq.s32.totalorder %s12, 1
    %p166 = por %p164, %p165
    %p167 = scmp.ne.s32.totalorder %s159, %s162
    %p168 = scmp.eq.s32.totalorder %s12, 0
    %p169 = por %p167, %p168
    %p170 = scmp.ne.s32.totalorder %s159, %s162
    %p171 = scmp.eq.s32.totalorder %s17, 1
    %p172 = por %p170, %p171
    %p173 = scmp.ne.s32.totalorder %s162, %s163
    %p174 = scmp.eq.s32.totalorder %s17, 0
    %p175 = por %p173, %p174
    %p176 = scmp.ne.s32.totalorder %s162, %s163
    %p177 = scmp.eq.s32.totalorder %s18, 1
    %p178 = por %p176, %p177
    %p180 = scmp.ne.s32.totalorder %s163, %s179
    %p181 = scmp.eq.s32.totalorder %s18, 0
    %p182 = por %p180, %p181
    %s183 = ssub.s32 %s19, %s38
    %s184 = ssub.s32 %s20, %s34
    %s185 = sor.u32 %s183, %s184
    %p186 = scmp.eq.s32.totalorder %s185, 0
    %s188 = sadd.s32 %s187, 1
    %s189 = scalar_select %p186, %s187, %s188
    %p192 = pneg %p186
    %p193 = scmp.eq.s32.totalorder %s12, 1
    %p194 = por %p192, %p193
    %p195 = scmp.ne.s32.totalorder %s187, %s190
    %p196 = scmp.eq.s32.totalorder %s12, 0
    %p197 = por %p195, %p196
    %p198 = scmp.ne.s32.totalorder %s187, %s190
    %p199 = scmp.eq.s32.totalorder %s17, 1
    %p200 = por %p198, %p199
    %p201 = scmp.ne.s32.totalorder %s190, %s191
    %p202 = scmp.eq.s32.totalorder %s17, 0
    %p203 = por %p201, %p202
    %p204 = scmp.ne.s32.totalorder %s190, %s191
    %p205 = scmp.eq.s32.totalorder %s18, 1
    %p206 = por %p204, %p205
    %p208 = scmp.ne.s32.totalorder %s191, %s207
    %p209 = scmp.eq.s32.totalorder %s18, 0
    %p210 = por %p208, %p209
    %p211 = scmp.le.s32.totalorder 1, %s12
    %p212 = scmp.lt.s32.totalorder %s12, 3
    %p213 = pnand %p211, %p212
    %p214 = pneg %p213
    // Predicated region
    $region9: #{_fused_seg_stats.1} parent=5 // pred_check
      _
    $region10: #{_fused_seg_stats.1} parent=5 // pred_check_branch
      %216 = sbr.rel (%p213) target = $region12
    $region11: #{_fused_seg_stats.1} parent=5 // pred_region
      %s217 = ssub.s32 %s12, 1
    $region12: #{_fused_seg_stats.1} parent=5 // pred_fallthru
      _
    %p218 = scmp.lt.s32.totalorder %s12, 2
    // Predicated region
    $region13: #{_fused_seg_stats.1} parent=5 // pred_check
      %p219 = pneg %p218
    $region14: #{_fused_seg_stats.1} parent=5 // pred_check_branch
      %221 = sbr.rel (%p219) target = $region16
    $region15: #{_fused_seg_stats.1} parent=5 // pred_region
      // Predicated region
      $region17: #{_fused_seg_stats.1} parent=15 // pred_check
        %p222 = pneg %p55
      $region18: #{_fused_seg_stats.1} parent=15 // pred_check_branch
        %224 = sbr.rel (%p222) target = $region20
      $region19: #{_fused_seg_stats.1} parent=15 // pred_region
        %s225 = sadd.s32 %s20, %s21
        %s226 = smul.u32 2, %s225
        %p227 = scmp.lt.s32.totalorder %s19, 1
        %s228 = scalar_select %p227, %s19, 1
        %p229 = scmp.lt.s32.totalorder %s226, 1
        %s230 = scalar_select %p229, %s226, 1
        %s231 = smul.addr %s228, 2
        %s232 = sadd.s32 %s230, %s231
        %s233 = smul.addr %s232, 4
        %s234 = scalar_lea.vmem %s0, %s233
        %s235 = sadd.s32 %s20, %s21
        %s236 = smul.u32 2, %s235
      $region20: #{_fused_seg_stats.1} parent=15 // pred_fallthru
        _
      // Predicated region
      $region21: #{_fused_seg_stats.1} parent=15 // pred_check
        %p237 = pneg %p85
      $region22: #{_fused_seg_stats.1} parent=15 // pred_check_branch
        %239 = sbr.rel (%p237) target = $region24
      $region23: #{_fused_seg_stats.1} parent=15 // pred_region
        %s240 = sadd.s32 %s20, %s21
        %s241 = smul.u32 2, %s240
        %p242 = scmp.lt.s32.totalorder %s19, 1
        %s243 = scalar_select %p242, %s19, 1
        %p244 = scmp.lt.s32.totalorder %s241, 1
        %s245 = scalar_select %p244, %s241, 1
        %s246 = smul.addr %s243, 2
        %s247 = sadd.s32 %s245, %s246
        %s248 = scalar_lea.vmem %s1, %s247
        %s249 = sadd.s32 %s20, %s21
        %s250 = smul.u32 2, %s249
      $region24: #{_fused_seg_stats.1} parent=15 // pred_fallthru
        _
    $region16: #{_fused_seg_stats.1} parent=5 // pred_fallthru
      _
    %p251 = scmp.le.s32.totalorder 1, %s12
    %p252 = scmp.lt.s32.totalorder %s12, 3
    %p253 = pnand %p251, %p252
    %p254 = pneg %p253
    // Predicated region
    $region25: #{_fused_seg_stats.1} parent=5 // pred_check
      _
    $region26: #{_fused_seg_stats.1} parent=5 // pred_check_branch
      %256 = sbr.rel (%p253) target = $region28
    $region27: #{_fused_seg_stats.1} parent=5 // pred_region
      %s257 = ssub.s32 %s12, 1
      %s258 = sadd.s32 %s23, %s24
      %s259 = smul.u32 2, %s258
      %p260 = scmp.lt.s32.totalorder %s22, 1
      %s261 = scalar_select %p260, %s22, 1
      %p262 = scmp.lt.s32.totalorder %s259, 1
      %s263 = scalar_select %p262, %s259, 1
      %s264 = smul.addr %s261, 2
      %s265 = sadd.s32 %s263, %s264
      %s266 = smul.addr %s265, 4
      %s267 = scalar_lea.vmem %s0, %s266
      %p268 = pneg %p61
      %p269 = pneg %p58
      %s270 = sadd.s32 %s23, %s24
      %s271 = smul.u32 2, %s270
      %p272 = scmp.lt.s32.totalorder %s22, 1
      %s273 = scalar_select %p272, %s22, 1
      %p274 = scmp.lt.s32.totalorder %s271, 1
      %s275 = scalar_select %p274, %s271, 1
      %s276 = smul.addr %s273, 2
      %s277 = sadd.s32 %s275, %s276
      %s278 = scalar_lea.vmem %s1, %s277
      %p279 = pneg %p91
      %p280 = pneg %p88
      %p281 = pneg %p119
      %p282 = pneg %p116
      %p283 = scmp.lt.s32.totalorder %s22, 1
      %s284 = scalar_select %p283, %s22, 1
      %p285 = scmp.lt.s32.totalorder %s23, 0
      %s286 = scalar_select %p285, %s23, 0
      %s287 = sadd.s32 %s286, %s284
      %s288 = scalar_lea.vmem %s2, %s287
      %p289 = pneg %p147
      %p290 = pneg %p144
      %p291 = scmp.lt.s32.totalorder %s22, 1
      %s292 = scalar_select %p291, %s22, 1
      %p293 = scmp.lt.s32.totalorder %s23, 0
      %s294 = scalar_select %p293, %s23, 0
      %s295 = sadd.s32 %s294, %s292
      %s296 = smul.addr %s295, 4
      %s297 = scalar_lea.vmem %s3, %s296
      %p298 = pneg %p175
      %p299 = pneg %p172
      %p300 = scmp.lt.s32.totalorder %s22, 1
      %s301 = scalar_select %p300, %s22, 1
      %p302 = scmp.lt.s32.totalorder %s23, 0
      %s303 = scalar_select %p302, %s23, 0
      %s304 = sadd.s32 %s303, %s301
      %s305 = smul.addr %s304, 4
      %s306 = scalar_lea.vmem %s4, %s305
      %p307 = pneg %p203
      %p308 = pneg %p200
      %p309 = scmp.lt.s32.totalorder %s22, 1
      %s310 = scalar_select %p309, %s22, 1
      %p311 = scmp.lt.s32.totalorder %s23, 0
      %s312 = scalar_select %p311, %s23, 0
      %s313 = sadd.s32 %s312, %s310
      %s314 = smul.addr %s313, 4
      %s315 = scalar_lea.vmem %s5, %s314
      %s316 = sadd.s32 %s23, %s24
      %s317 = smul.u32 2, %s316
      %p318 = scmp.lt.s32.totalorder %s22, 1
      %s319 = scalar_select %p318, %s22, 1
      %p320 = scmp.lt.s32.totalorder %s317, 1
      %s321 = scalar_select %p320, %s317, 1
      %s322 = smul.addr %s319, 2
      %s323 = sadd.s32 %s321, %s322
      %s324 = smul.addr %s323, 4
      %s325 = scalar_lea.vmem %s0, %s324
      %s326 = sadd.s32 %s23, %s24
      %s327 = smul.u32 2, %s326
      %s328 = sadd.s32 %s23, %s24
      %s329 = smul.u32 2, %s328
      %p330 = scmp.lt.s32.totalorder %s22, 1
      %s331 = scalar_select %p330, %s22, 1
      %p332 = scmp.lt.s32.totalorder %s329, 1
      %s333 = scalar_select %p332, %s329, 1
      %s334 = smul.addr %s331, 2
      %s335 = sadd.s32 %s333, %s334
      %s336 = scalar_lea.vmem %s1, %s335
      %s337 = sadd.s32 %s23, %s24
      %s338 = smul.u32 2, %s337
      %p339 = scmp.lt.s32.totalorder %s22, 1
      %s340 = scalar_select %p339, %s22, 1
      %p341 = scmp.lt.s32.totalorder %s23, 0
      %s342 = scalar_select %p341, %s23, 0
      %s343 = sadd.s32 %s342, %s340
      %s344 = scalar_lea.vmem %s2, %s343
      %p345 = scmp.lt.s32.totalorder %s22, 1
      %s346 = scalar_select %p345, %s22, 1
      %p347 = scmp.lt.s32.totalorder %s23, 0
      %s348 = scalar_select %p347, %s23, 0
      %s349 = sadd.s32 %s348, %s346
      %s350 = smul.addr %s349, 4
      %s351 = scalar_lea.vmem %s3, %s350
      %p352 = scmp.lt.s32.totalorder %s22, 1
      %s353 = scalar_select %p352, %s22, 1
      %p354 = scmp.lt.s32.totalorder %s23, 0
      %s355 = scalar_select %p354, %s23, 0
      %s356 = sadd.s32 %s355, %s353
      %s357 = smul.addr %s356, 4
      %s358 = scalar_lea.vmem %s4, %s357
      %p359 = scmp.lt.s32.totalorder %s22, 1
      %s360 = scalar_select %p359, %s22, 1
      %p361 = scmp.lt.s32.totalorder %s23, 0
      %s362 = scalar_select %p361, %s23, 0
      %s363 = sadd.s32 %s362, %s360
      %s364 = smul.addr %s363, 4
      %s365 = scalar_lea.vmem %s5, %s364
      %p366 = scmp.eq.s32.totalorder %s24, 0
      // Predicated region
      $region29: #{_fused_seg_stats.1} parent=27 // pred_check
        %p367 = pneg %p366
      $region30: #{_fused_seg_stats.1} parent=27 // pred_check_branch
        %369 = sbr.rel (%p367) target = $region32
      $region31: #{_fused_seg_stats.1} parent=27 // pred_region
        %vm370 = vcmask 0
        %371 = vst.msk [vmem:[%s344] sm:$0x1] %vm370, 0.0
        %vm372 = vcmask 3072
        %373 = vst.msk [vmem:[%s351] sm:$0xf] %vm372, 0.0
        %374 = vst.msk [vmem:[%s358] sm:$0xf] %vm372, 0.0
        %375 = vst.msk [vmem:[%s365] sm:$0xf] %vm372, 0.0
      $region32: #{_fused_seg_stats.1} parent=27 // pred_fallthru
        _
      %v376 = vld [vmem:[%s325] sm:$0xff]
      %v377 = vld [vmem:[%s336] sm:$0x3]
      %v378 = vlaneseq
      %v379 = vshrl.u32 %v378, 7
      %v380 = vlaneseq
      %v381 = vshrl.u32 %v380, 7
      %v382 = vsub.s32 0, %v381
      %v383 = vrot.slane %v377, %v382
      %v384 = vlaneseq
      %v385 = vshrl.u32 %v384, 7
      %v386 = vsub.s32 1, %v385
      %v387 = vrot.slane %v377, %v386
      %vm388 = vcmp.eq.s32.totalorder %v379, %v383
      %vm389 = vcmp.eq.s32.totalorder %v379, %v387
      %vm390 = vcmp.ge.s32.totalorder %v377, 0
      %vm391 = vcmp.lt.s32.totalorder %v377, 4
      %vm392 = vmand %vm390, %vm391
      %v393 = vsel %vm392, 1, 0
      %v394 = vcvt.s32.f32 %v393
      %v396 = vcombine.high %v376, %v376
      %vm398 = vcmask 1043456
      %v399 = vsel %vm398, %v376, -inf
      %v400 = vrot.slane %v399, 4
      %v401 = vmax.f32 %v399, %v400
      %v402 = vrot.slane %v401, 2
      %v403 = vmax.f32 %v401, %v402
      %v404 = vrot.slane %v403, 1
      %v405 = vmax.f32 %v403, %v404
      %v406 = vsel %vm398, %v396, -inf
      %v407 = vrot.slane %v406, 4
      %v408 = vmax.f32 %v406, %v407
      %v409 = vrot.slane %v408, 2
      %v410 = vmax.f32 %v408, %v409
      %v411 = vrot.slane %v410, 1
      %v412 = vmax.f32 %v410, %v411
      %v415 = vcombine.low %v405, %v412
      %v417 = vsub.f32 %v376, %v415
      %v418 = vmul.f32 %v417, 1.442695
      %v419 = vpow.pop %v418
      %v421 = vcombine.high %v419, %v419
      %v423 = vsel %vm398, %v419, 0.0
      %v424 = vrot.slane %v423, 4
      %v425 = vadd.f32 %v423, %v424
      %v426 = vrot.slane %v425, 2
      %v427 = vadd.f32 %v425, %v426
      %v428 = vrot.slane %v427, 1
      %v429 = vadd.f32 %v427, %v428
      %v430 = vsel %vm398, %v421, 0.0
      %v431 = vrot.slane %v430, 4
      %v432 = vadd.f32 %v430, %v431
      %v433 = vrot.slane %v432, 2
      %v434 = vadd.f32 %v432, %v433
      %v435 = vrot.slane %v434, 1
      %v436 = vadd.f32 %v434, %v435
      %v437 = vlog2.pop %v429
      %v438 = vmul.f32 %v437, 0.6931472
      %v439 = vlog2.pop %v436
      %v440 = vmul.f32 %v439, 0.6931472
      %v441 = vadd.f32 %v405, %v438
      %v442 = vadd.f32 %v412, %v440
      %v443 = vrcp.pop %v429
      %v444 = vrcp.pop %v436
      %v445 = vmul.f32 %v429, %v443
      %v446 = vmul.f32 %v436, %v444
      %v447 = vsub.f32 2.0, %v445
      %v448 = vsub.f32 2.0, %v446
      %v449 = vmul.f32 %v443, %v447
      %v450 = vmul.f32 %v444, %v448
      %v452 = vlaneseq
      %v453 = vshrl.u32 %v452, 7
      %v454 = vsub.s32 0, %v453
      %v455 = vrot.slane %v394, %v454
      %v456 = vlaneseq
      %v457 = vshrl.u32 %v456, 7
      %v458 = vsub.s32 1, %v457
      %v459 = vrot.slane %v394, %v458
      %v462 = vmul.f32 %v449, %v455
      %v463 = vmul.f32 %v450, %v459
      %v464 = vlaneseq
      %v465 = vshrl.u32 %v464, 7
      %v466 = vsub.s32 0, %v465
      %v467 = vrot.slane %v462, %v466
      %v468 = vlaneseq
      %v469 = vshrl.u32 %v468, 7
      %v470 = vsub.s32 0, %v469
      %v471 = vrot.slane %v463, %v470
      %v474 = vcombine.low %v467, %v471
      %v476 = vmul.f32 %v419, %v474
      %v477 = vsel %vm388, %v376, 0.0
      %v478 = vsel %vm389, %v396, 0.0
      %v479 = vsel %vm398, %v477, 0.0
      %v480 = vrot.slane %v479, 4
      %v481 = vadd.f32 %v479, %v480
      %v482 = vrot.slane %v481, 2
      %v483 = vadd.f32 %v481, %v482
      %v484 = vrot.slane %v483, 1
      %v485 = vadd.f32 %v483, %v484
      %v486 = vsel %vm398, %v478, 0.0
      %v487 = vrot.slane %v486, 4
      %v488 = vadd.f32 %v486, %v487
      %v489 = vrot.slane %v488, 2
      %v490 = vadd.f32 %v488, %v489
      %v491 = vrot.slane %v490, 1
      %v492 = vadd.f32 %v490, %v491
      %v493 = vsub.f32 %v441, %v485
      %v494 = vsub.f32 %v442, %v492
      %v495 = vmul.f32 %v493, %v455
      %v496 = vmul.f32 %v494, %v459
      %v498 = vcombine.high %v476, %v476
      %v500 = vsel %vm388, %v476, 0.0
      %v501 = vsel %vm389, %v498, 0.0
      %v502 = vsel %vm398, %v500, 0.0
      %v503 = vsel %vm398, %v501, 0.0
      %v504 = vadd.f32 %v502, %v503
      %505 = vadd.xlane.f32.xlu0 %v504
      %v506 = vpop.xlane.xlu0 %505
      %v507 = vsel %vm398, %v476, 0.0
      %v508 = vsel %vm398, %v498, 0.0
      %v509 = vadd.f32 %v507, %v508
      %510 = vadd.xlane.f32.xlu0 %v509
      %v511 = vpop.xlane.xlu0 %510
      %v512 = vsel %vm388, 1, 0
      %v513 = vsel %vm389, 1, 0
      %v514 = vcvt.s32.f32 %v512
      %v515 = vcvt.s32.f32 %v513
      %v516 = vsel %vm398, %v514, 0.0
      %v517 = vsel %vm398, %v515, 0.0
      %v518 = vadd.f32 %v516, %v517
      %519 = vadd.xlane.f32.xlu0 %v518
      %v520 = vpop.xlane.xlu0 %519
      %vm521 = vcmask 1040384
      %v522 = vsel %vm521, %v495, 0.0
      %v523 = vsel %vm521, %v496, 0.0
      %v524 = vadd.f32 %v522, %v523
      %525 = vadd.xlane.f32.xlu0 %v524
      %v526 = vpop.xlane.xlu0 %525
      %v527 = vld [vmem:[%s344] sm:$0x1]
      %v528 = vadd.f32 %v527, %v526
      %vm529 = vcmask 0
      %530 = vst.msk [vmem:[%s344] sm:$0x1] %vm529, %v528
      %v531 = vld [vmem:[%s351] sm:$0xf]
      %v532 = vadd.f32 %v531, %v506
      %vm533 = vcmask 3072
      %534 = vst.msk [vmem:[%s351] sm:$0xf] %vm533, %v532
      %v535 = vld [vmem:[%s358] sm:$0xf]
      %v536 = vadd.f32 %v535, %v511
      %537 = vst.msk [vmem:[%s358] sm:$0xf] %vm533, %v536
      %v538 = vld [vmem:[%s365] sm:$0xf]
      %v539 = vadd.f32 %v538, %v520
      %540 = vst.msk [vmem:[%s365] sm:$0xf] %vm533, %v539
      %p541 = scmp.lt.s32.totalorder %s22, 1
      %s542 = scalar_select %p541, %s22, 1
      %p543 = scmp.lt.s32.totalorder %s23, 0
      %s544 = scalar_select %p543, %s23, 0
      %s545 = sadd.s32 %s544, %s542
      %s546 = scalar_lea.vmem %s2, %s545
      %p547 = scmp.lt.s32.totalorder %s22, 1
      %s548 = scalar_select %p547, %s22, 1
      %p549 = scmp.lt.s32.totalorder %s23, 0
      %s550 = scalar_select %p549, %s23, 0
      %s551 = sadd.s32 %s550, %s548
      %s552 = smul.addr %s551, 4
      %s553 = scalar_lea.vmem %s3, %s552
      %p554 = scmp.lt.s32.totalorder %s22, 1
      %s555 = scalar_select %p554, %s22, 1
      %p556 = scmp.lt.s32.totalorder %s23, 0
      %s557 = scalar_select %p556, %s23, 0
      %s558 = sadd.s32 %s557, %s555
      %s559 = smul.addr %s558, 4
      %s560 = scalar_lea.vmem %s4, %s559
      %p561 = scmp.lt.s32.totalorder %s22, 1
      %s562 = scalar_select %p561, %s22, 1
      %p563 = scmp.lt.s32.totalorder %s23, 0
      %s564 = scalar_select %p563, %s23, 0
      %s565 = sadd.s32 %s564, %s562
      %s566 = smul.addr %s565, 4
      %s567 = scalar_lea.vmem %s5, %s566
      // Predicated region
      $region33: #{_fused_seg_stats.1} parent=27 // pred_check
        %p568 = pneg %p116
      $region34: #{_fused_seg_stats.1} parent=27 // pred_check_branch
        %570 = sbr.rel (%p568) target = $region36
      $region35: #{_fused_seg_stats.1} parent=27 // pred_region
        _
      $region36: #{_fused_seg_stats.1} parent=27 // pred_fallthru
        _
      // Predicated region
      $region37: #{_fused_seg_stats.1} parent=27 // pred_check
        %p571 = pneg %p144
      $region38: #{_fused_seg_stats.1} parent=27 // pred_check_branch
        %573 = sbr.rel (%p571) target = $region40
      $region39: #{_fused_seg_stats.1} parent=27 // pred_region
        _
      $region40: #{_fused_seg_stats.1} parent=27 // pred_fallthru
        _
      // Predicated region
      $region41: #{_fused_seg_stats.1} parent=27 // pred_check
        %p574 = pneg %p172
      $region42: #{_fused_seg_stats.1} parent=27 // pred_check_branch
        %576 = sbr.rel (%p574) target = $region44
      $region43: #{_fused_seg_stats.1} parent=27 // pred_region
        _
      $region44: #{_fused_seg_stats.1} parent=27 // pred_fallthru
        _
      // Predicated region
      $region45: #{_fused_seg_stats.1} parent=27 // pred_check
        %p577 = pneg %p200
      $region46: #{_fused_seg_stats.1} parent=27 // pred_check_branch
        %579 = sbr.rel (%p577) target = $region48
      $region47: #{_fused_seg_stats.1} parent=27 // pred_region
        _
      $region48: #{_fused_seg_stats.1} parent=27 // pred_fallthru
        _
    $region28: #{_fused_seg_stats.1} parent=5 // pred_fallthru
      _
    %p580 = scmp.le.s32.totalorder 2, %s12
    // Predicated region
    $region49: #{_fused_seg_stats.1} parent=5 // pred_check
      %p581 = pneg %p580
    $region50: #{_fused_seg_stats.1} parent=5 // pred_check_branch
      %583 = sbr.rel (%p581) target = $region52
    $region51: #{_fused_seg_stats.1} parent=5 // pred_region
      %s584 = ssub.s32 %s12, 2
      // Predicated region
      $region53: #{_fused_seg_stats.1} parent=51 // pred_check
        %p585 = pneg %p122
      $region54: #{_fused_seg_stats.1} parent=51 // pred_check_branch
        %587 = sbr.rel (%p585) target = $region56
      $region55: #{_fused_seg_stats.1} parent=51 // pred_region
        %p588 = scmp.lt.s32.totalorder %s25, 1
        %s589 = scalar_select %p588, %s25, 1
        %p590 = scmp.lt.s32.totalorder %s26, 0
        %s591 = scalar_select %p590, %s26, 0
        %s592 = sadd.s32 %s591, %s589
        %s593 = scalar_lea.vmem %s2, %s592
      $region56: #{_fused_seg_stats.1} parent=51 // pred_fallthru
        _
      // Predicated region
      $region57: #{_fused_seg_stats.1} parent=51 // pred_check
        %p594 = pneg %p150
      $region58: #{_fused_seg_stats.1} parent=51 // pred_check_branch
        %596 = sbr.rel (%p594) target = $region60
      $region59: #{_fused_seg_stats.1} parent=51 // pred_region
        %p597 = scmp.lt.s32.totalorder %s25, 1
        %s598 = scalar_select %p597, %s25, 1
        %p599 = scmp.lt.s32.totalorder %s26, 0
        %s600 = scalar_select %p599, %s26, 0
        %s601 = sadd.s32 %s600, %s598
        %s602 = smul.addr %s601, 4
        %s603 = scalar_lea.vmem %s3, %s602
      $region60: #{_fused_seg_stats.1} parent=51 // pred_fallthru
        _
      // Predicated region
      $region61: #{_fused_seg_stats.1} parent=51 // pred_check
        %p604 = pneg %p178
      $region62: #{_fused_seg_stats.1} parent=51 // pred_check_branch
        %606 = sbr.rel (%p604) target = $region64
      $region63: #{_fused_seg_stats.1} parent=51 // pred_region
        %p607 = scmp.lt.s32.totalorder %s25, 1
        %s608 = scalar_select %p607, %s25, 1
        %p609 = scmp.lt.s32.totalorder %s26, 0
        %s610 = scalar_select %p609, %s26, 0
        %s611 = sadd.s32 %s610, %s608
        %s612 = smul.addr %s611, 4
        %s613 = scalar_lea.vmem %s4, %s612
      $region64: #{_fused_seg_stats.1} parent=51 // pred_fallthru
        _
      // Predicated region
      $region65: #{_fused_seg_stats.1} parent=51 // pred_check
        %p614 = pneg %p206
      $region66: #{_fused_seg_stats.1} parent=51 // pred_check_branch
        %616 = sbr.rel (%p614) target = $region68
      $region67: #{_fused_seg_stats.1} parent=51 // pred_region
        %p617 = scmp.lt.s32.totalorder %s25, 1
        %s618 = scalar_select %p617, %s25, 1
        %p619 = scmp.lt.s32.totalorder %s26, 0
        %s620 = scalar_select %p619, %s26, 0
        %s621 = sadd.s32 %s620, %s618
        %s622 = smul.addr %s621, 4
        %s623 = scalar_lea.vmem %s5, %s622
      $region68: #{_fused_seg_stats.1} parent=51 // pred_fallthru
        _
    $region52: #{_fused_seg_stats.1} parent=5 // pred_fallthru
      _
  $region6: #{_fused_seg_stats.1} parent=0 // loop_footer
    %s16 = sadd.s32 1, %s12
  $region7: #{_fused_seg_stats.1} parent=0 // loop_footer_branch
    %11 = sbr.rel target = $region3
  $region8: #{_fused_seg_stats.1} parent=0 // loop_exit
    _

</llo_original>
